<compile_context>
chip_gen: v6e
topology: v6e:2x2x1
jax: 0.10.0
libtpu: 0.0.40
codegen_flags: <defaults>
</compile_context>

<pallas_src>
import jax
import jax.numpy as jnp
from jax.experimental import pallas as pl
from jax.experimental.pallas import tpu as pltpu


def _round_up(x, m):
    return ((x + m - 1) // m) * m


def _vmem_capacity_bytes():
    try:
        return int(pltpu.get_tpu_info().vmem_capacity_bytes)
    except Exception:
        return 64 * 1024 * 1024  # conservative fallback (v7x per-TC VMEM)


def _wmsepp_kernel(yhat_ref, y_ref, wpos_ref, wneg_ref, out_ref):
    # Yhat tile arrives in its native dtype (cheaper DMA); cast on the VPU.
    yhat = yhat_ref[...].astype(jnp.float32)      # (TB, N)
    y = y_ref[...]                                # (1, N), broadcasts over TB
    # Weights are pre-clamped and pre-scaled by 1/N in the wrapper.
    # At yhat == y the diff is 0, so the (yhat < y) branch is redundant.
    w = jnp.where(yhat > y, wpos_ref[...], wneg_ref[...])          # (TB, N)
    diff = yhat - y
    # Exact f32 lane reduction; mean scale already folded into w.
    out_ref[...] = jnp.sum(diff * diff * w, axis=-1, keepdims=True)  # (TB, 1)


def weighted_mse_plus_plus(yhats, y, weights_pos, weights_neg, min_val=0.001,
                           batch_tile=None):
    """Pallas implementation of WeightedMSEPlusPlus.forward.

    yhats: any shape whose total size is a multiple of y.size; reshaped to
           (-1, N) like the PyTorch .view().
    y, weights_pos, weights_neg: parameters with N total elements.
    Returns: (B,) weighted MSE per row, float32.
    """
    n = int(y.size)
    yhat = jnp.reshape(yhats, (-1, n))            # native dtype, no HBM upcast
    b = yhat.shape[0]
    itemsize = jnp.dtype(yhat.dtype).itemsize

    # Per-row VMEM footprint: input row + lane-padded (TB, 1) f32 output row.
    in_row = n * itemsize
    out_row = 128 * 4
    row_bytes = in_row + out_row
    min_steps = 8

    if batch_tile is None:
        vmem_cap = _vmem_capacity_bytes()
        # Single-buffer byte budget; the double-buffered pair uses 2x this.
        per_buf_budget = min(vmem_cap // 6, 16 * 1024 * 1024)
        batch_tile = max(8, (per_buf_budget // row_bytes) // 8 * 8)
        # Ensure >= min_steps grid steps when B is large enough: per-core
        # DMA/compute overlap plus megacore sharding of the "parallel" axis
        # across v7x's two TensorCores, with a ~0.5 MiB-per-tile floor.
        if -(-b // batch_tile) < min_steps and b > min_steps * 8:
            tile_floor = max(8, ((512 * 1024) // row_bytes) // 8 * 8)
            split_tile = max(8, _round_up(-(-b // min_steps), 8))
            batch_tile = min(batch_tile, max(split_tile, tile_floor))
    batch_tile = max(8, (int(batch_tile) // 8) * 8)
    batch_tile = min(batch_tile, _round_up(b, 8))

    num_steps = pl.cdiv(b, batch_tile)

    # Params: (1, N) rows, f32, clamped ONCE here; 1/N mean scale folded in.
    inv_n = jnp.float32(1.0 / n)
    y2 = jnp.reshape(y, (1, n)).astype(jnp.float32)
    wp2 = jnp.maximum(jnp.reshape(weights_pos, (1, n)).astype(jnp.float32),
                      jnp.float32(min_val)) * inv_n
    wn2 = jnp.maximum(jnp.reshape(weights_neg, (1, n)).astype(jnp.float32),
                      jnp.float32(min_val)) * inv_n

    # VMEM request: double-buffered input + (lane-padded) output tiles,
    # double-buffered resident (1, N) params, plus slack; never above the
    # physical VMEM of this generation.
    n_pad = _round_up(n, 128)
    vmem_need = (2 * batch_tile * in_row          # Yhat double buffer
                 + 2 * batch_tile * out_row       # output double buffer (padded)
                 + 2 * 3 * 8 * n_pad * 4          # (1, N) params, double-buffered
                 + (2 << 20))                     # slack
    vmem_limit = min(_vmem_capacity_bytes(),
                     max(32 * 1024 * 1024, vmem_need))

    out = pl.pallas_call(
        _wmsepp_kernel,
        out_shape=jax.ShapeDtypeStruct((b, 1), jnp.float32),
        grid_spec=pltpu.PrefetchScalarGridSpec(
            num_scalar_prefetch=0,
            grid=(num_steps,),
            in_specs=[
                pl.BlockSpec((batch_tile, n), lambda i: (i, 0)),  # Yhat tile
                pl.BlockSpec((1, n), lambda i: (0, 0)),           # Y (resident)
                pl.BlockSpec((1, n), lambda i: (0, 0)),           # wpos/N
                pl.BlockSpec((1, n), lambda i: (0, 0)),           # wneg/N
            ],
            out_specs=pl.BlockSpec((batch_tile, 1), lambda i: (i, 0)),
        ),
        compiler_params=pltpu.CompilerParams(
            dimension_semantics=("parallel",),
            vmem_limit_bytes=int(vmem_limit)),
    )(yhat, y2, wp2, wn2)
    return out[:, 0]


def weighted_mse_plus_plus_ref(yhats, y, weights_pos, weights_neg, min_val=0.001):
    """Pure-JAX reference mirroring the PyTorch forward."""
    n = int(y.size)
    yhat = jnp.reshape(yhats, (-1, n)).astype(jnp.float32)
    yf = jnp.reshape(y, (-1,)).astype(jnp.float32)
    wp = jnp.maximum(jnp.reshape(weights_pos, (-1,)).astype(jnp.float32), min_val)
    wn = jnp.maximum(jnp.reshape(weights_neg, (-1,)).astype(jnp.float32), min_val)
    pos_w = (yhat > yf[None, :]).astype(jnp.float32) * wp
    neg_w = (yhat < yf[None, :]).astype(jnp.float32) * wn
    sq = (yhat - yf[None, :]) ** 2
    return jnp.mean(sq * (pos_w + neg_w), axis=-1)


if __name__ == "__main__":
    key = jax.random.PRNGKey(0)
    k_y, k_wp, k_wn, k_yhat, k_yhat2 = jax.random.split(key, 5)

    min_val = 0.001
    # Target Y is an arbitrary tensor flattened to (N,): pick (16, 8) -> N=128.
    N = 128
    B = 10

    Y = jax.random.normal(k_y, (16, 8), dtype=jnp.float32)
    weights_pos = min_val + jax.random.uniform(k_wp, (N,), dtype=jnp.float32)
    weights_neg = min_val + jax.random.uniform(k_wn, (N,), dtype=jnp.float32)
    Yhats = jax.random.normal(k_yhat, (B, 16, 8), dtype=jnp.float32)

    out = jax.block_until_ready(
        weighted_mse_plus_plus(Yhats, Y, weights_pos, weights_neg, min_val))
    ref = jax.block_until_ready(
        weighted_mse_plus_plus_ref(Yhats, Y, weights_pos, weights_neg, min_val))
    assert out.shape == (B,)
    assert jnp.allclose(out, ref, atol=1e-5, rtol=1e-5), (out, ref)

    # Second check: bf16 predictions with an explicit small tile so the grid
    # has multiple steps and a ragged last block (exercises the native-dtype
    # DMA + in-kernel cast and partial-block masking paths).
    B2 = 37
    Yhats_bf16 = jax.random.normal(k_yhat2, (B2, 16, 8), dtype=jnp.bfloat16)
    out2 = jax.block_until_ready(
        weighted_mse_plus_plus(Yhats_bf16, Y, weights_pos, weights_neg, min_val,
                               batch_tile=8))
    ref2 = jax.block_until_ready(
        weighted_mse_plus_plus_ref(Yhats_bf16, Y, weights_pos, weights_neg,
                                   min_val))
    assert out2.shape == (B2,)
    assert jnp.allclose(out2, ref2, atol=1e-4, rtol=1e-4), (out2, ref2)

    print("KERNEL_OK")
</pallas_src>

<mosaic_0001>
module attributes {stable_mosaic.version = 11 : i64} {
  func.func @_wmsepp_kernel(%arg0: i32, %arg1: memref<16x128xf32, #tpu.memory_space<vmem>>, %arg2: memref<1x128xf32, #tpu.memory_space<vmem>>, %arg3: memref<1x128xf32, #tpu.memory_space<vmem>>, %arg4: memref<1x128xf32, #tpu.memory_space<vmem>>, %arg5: memref<16x1xf32, #tpu.memory_space<vmem>>) attributes {dimension_semantics = [#tpu.dimension_semantics<parallel>], iteration_bounds = array<i64: 1>, scalar_prefetch = 0 : i64, scratch_operands = 0 : i64, tpu.core_type = #tpu.core_type<tc>, window_params = [{transform_indices = @transform_0, window_bounds = array<i64: 16, 128>}, {pipeline_mode = #tpu.pipeline_mode<synchronous>, transform_indices = @transform_1, window_bounds = array<i64: 1, 128>}, {pipeline_mode = #tpu.pipeline_mode<synchronous>, transform_indices = @transform_2, window_bounds = array<i64: 1, 128>}, {pipeline_mode = #tpu.pipeline_mode<synchronous>, transform_indices = @transform_3, window_bounds = array<i64: 1, 128>}, {transform_indices = @transform_4, window_bounds = array<i64: 16, 1>}]} {
    %c0 = arith.constant 0 : index
    %c0_0 = arith.constant 0 : index
    %0 = vector.load %arg1[%c0, %c0_0] : memref<16x128xf32, #tpu.memory_space<vmem>>, vector<16x128xf32>
    %c0_1 = arith.constant 0 : index
    %c0_2 = arith.constant 0 : index
    %1 = vector.load %arg2[%c0_1, %c0_2] : memref<1x128xf32, #tpu.memory_space<vmem>>, vector<1x128xf32>
    %2 = vector.broadcast %1 : vector<1x128xf32> to vector<16x128xf32>
    %3 = arith.cmpf ogt, %0, %2 : vector<16x128xf32>
    %c0_3 = arith.constant 0 : index
    %c0_4 = arith.constant 0 : index
    %4 = vector.load %arg3[%c0_3, %c0_4] : memref<1x128xf32, #tpu.memory_space<vmem>>, vector<1x128xf32>
    %c0_5 = arith.constant 0 : index
    %c0_6 = arith.constant 0 : index
    %5 = vector.load %arg4[%c0_5, %c0_6] : memref<1x128xf32, #tpu.memory_space<vmem>>, vector<1x128xf32>
    %6 = vector.shape_cast %4 : vector<1x128xf32> to vector<1x128xf32>
    %7 = vector.broadcast %6 : vector<1x128xf32> to vector<16x128xf32>
    %8 = vector.shape_cast %5 : vector<1x128xf32> to vector<1x128xf32>
    %9 = vector.broadcast %8 : vector<1x128xf32> to vector<16x128xf32>
    %10 = arith.select %3, %7, %9 : vector<16x128xi1>, vector<16x128xf32>
    %11 = vector.broadcast %1 : vector<1x128xf32> to vector<16x128xf32>
    %12 = arith.subf %0, %11 : vector<16x128xf32>
    %13 = arith.mulf %12, %12 : vector<16x128xf32>
    %14 = arith.mulf %13, %10 : vector<16x128xf32>
    %cst = arith.constant dense<0.000000e+00> : vector<16xf32>
    %15 = vector.multi_reduction <add>, %14, %cst [1] : vector<16x128xf32> to vector<16xf32>
    %16 = vector.shape_cast %15 : vector<16xf32> to vector<16x1xf32>
    %c0_7 = arith.constant 0 : index
    %c0_8 = arith.constant 0 : index
    %17 = vector.load %arg5[%c0_7, %c0_8] : memref<16x1xf32, #tpu.memory_space<vmem>>, vector<16x1xf32>
    tpu.vector_store %arg5[%c0_7, %c0_8], %16 {strides = array<i32>} : memref<16x1xf32, #tpu.memory_space<vmem>>, vector<16x1xf32>,
    return
  }
  func.func @transform_0(%arg0: i32) -> (i32, i32) {
    %c0_i32 = arith.constant 0 : i32
    %c0_i32_0 = arith.constant 0 : i32
    return %arg0, %c0_i32 : i32, i32
  }
  func.func @transform_1(%arg0: i32) -> (i32, i32) {
    %c0_i32 = arith.constant 0 : i32
    %c0_i32_0 = arith.constant 0 : i32
    %c0_i32_1 = arith.constant 0 : i32
    return %c0_i32, %c0_i32_0 : i32, i32
  }
  func.func @transform_2(%arg0: i32) -> (i32, i32) {
    %c0_i32 = arith.constant 0 : i32
    %c0_i32_0 = arith.constant 0 : i32
    %c0_i32_1 = arith.constant 0 : i32
    return %c0_i32, %c0_i32_0 : i32, i32
  }
  func.func @transform_3(%arg0: i32) -> (i32, i32) {
    %c0_i32 = arith.constant 0 : i32
    %c0_i32_0 = arith.constant 0 : i32
    %c0_i32_1 = arith.constant 0 : i32
    return %c0_i32, %c0_i32_0 : i32, i32
  }
  func.func @transform_4(%arg0: i32) -> (i32, i32) {
    %c0_i32 = arith.constant 0 : i32
    %c0_i32_0 = arith.constant 0 : i32
    return %arg0, %c0_i32 : i32, i32
  }
}

</mosaic_0001>

<llo_original>
// kernel: tpu_custom_call.1
$region0: #{tpu_custom_call.1}
  #allocation0 [shape = 'u32[]', space=smem, size = 0x4, offset = 0x4, fixed_abs, tag = 'smem constant byte address 0x4 - core index']
  #allocation1 [shape = 'u32[144,128]{1,0:T(1,128)}', space=vmem, size = 0x12000, scoped, tag = 'internal scratch']
  %s0 = inlined_call_operand.hbm [shape: f32[10,128], index: 0, kind: input, shape index: {}]
  %s1 = inlined_call_operand.vmem [shape: f32[1,128], index: 1, kind: input, shape index: {}]
  %s2 = inlined_call_operand.vmem [shape: f32[1,128], index: 2, kind: input, shape index: {}]
  %s3 = inlined_call_operand.vmem [shape: f32[1,128], index: 3, kind: input, shape index: {}]
  %s4 = inlined_call_operand.vmem [shape: f32[10,1], index: 4, kind: output, shape index: {}]
  %s5 = sld [smem:[#allocation0]]
  $region30: #{tpu_custom_call.1} parent=0
    _
  %s7 = ssub.s32 1, %s5
  %s8 = scalar_select 0, %s7, %s5
  $region1: #{tpu_custom_call.1} parent=0
    #allocation2 [shape = 'u8[8192]{0}', space=vmem, size = 0x2000, scoped, tag = 'input window, operand 0, single buffered']
    #allocation3 [shape = 's32[1]{0}', space=sflag, size = 0x4, scoped, tag = 'scoped memory for tpu_custom_call.1']
    %9 = vsyncpa [#allocation3], 0
    // Predicated region
    $region2: #{tpu_custom_call.1} parent=1 // pred_check
      _
    $region3: #{tpu_custom_call.1} parent=1 // pred_check_branch
      %11 = sbr.rel (0) target = $region5
    $region4: #{tpu_custom_call.1} parent=1 // pred_region
      %s13 = ssub.s32 256, 256
      %14 = vsyncadd [#allocation3], %s13
      %s15 = sshll.u32 [#allocation2], 4
      %s16 = int_to_ptr.vmem [resolvable:$true] %s15
      %21 = dma.hbm_to_vmem [thread:$0]  %s0, 256, %s16, [#allocation3], 128, 128, 8
    $region5: #{tpu_custom_call.1} parent=1 // pred_fallthru
      _
    // Predicated region
    $region6: #{tpu_custom_call.1} parent=1 // pred_check
      _
    $region7: #{tpu_custom_call.1} parent=1 // pred_check_branch
      %23 = sbr.rel (0) target = $region9
    $region8: #{tpu_custom_call.1} parent=1 // pred_region
      _
    $region9: #{tpu_custom_call.1} parent=1 // pred_fallthru
      _
    // Predicated region
    $region10: #{tpu_custom_call.1} parent=1 // pred_check
      _
    $region11: #{tpu_custom_call.1} parent=1 // pred_check_branch
      %25 = sbr.rel (0) target = $region13
    $region12: #{tpu_custom_call.1} parent=1 // pred_region
      _
    $region13: #{tpu_custom_call.1} parent=1 // pred_fallthru
      _
    // Predicated region
    $region14: #{tpu_custom_call.1} parent=1 // pred_check
      _
    $region15: #{tpu_custom_call.1} parent=1 // pred_check_branch
      %27 = sbr.rel (0) target = $region17
    $region16: #{tpu_custom_call.1} parent=1 // pred_region
      _
    $region17: #{tpu_custom_call.1} parent=1 // pred_fallthru
      _
    // Predicated region
    $region18: #{tpu_custom_call.1} parent=1 // pred_check
      _
    $region19: #{tpu_custom_call.1} parent=1 // pred_check_branch
      %29 = sbr.rel (0) target = $region21
    $region20: #{tpu_custom_call.1} parent=1 // pred_region
      %30 = dma.done [#allocation3], 256
    $region21: #{tpu_custom_call.1} parent=1 // pred_fallthru
      _
    %v31 = vld [vmem:[#allocation2] sm:$0xff]
    %v32 = vld [vmem:[#allocation2 + $0x8] sm:$0xff]
    %v33 = vld [vmem:[%s1] sm:$0x1]
    %v35 = vlaneseq
    %v36 = vshrl.u32 %v35, 7
    %v37 = vsub.s32 0, %v36
    %v38 = vrot.slane %v33, %v37
    %vm40 = vcmp.gt.f32.partialorder %v31, %v38
    %vm41 = vcmp.gt.f32.partialorder %v32, %v38
    %v42 = vld [vmem:[%s2] sm:$0x1]
    %v43 = vld [vmem:[%s3] sm:$0x1]
    %v45 = vlaneseq
    %v46 = vshrl.u32 %v45, 7
    %v47 = vsub.s32 0, %v46
    %v48 = vrot.slane %v42, %v47
    %v51 = vlaneseq
    %v52 = vshrl.u32 %v51, 7
    %v53 = vsub.s32 0, %v52
    %v54 = vrot.slane %v43, %v53
    %v56 = vsel %vm40, %v48, %v54
    %v57 = vsel %vm41, %v48, %v54
    %v58 = vsub.f32 %v31, %v38
    %v59 = vsub.f32 %v32, %v38
    %v60 = vmul.f32 %v58, %v58
    %v61 = vmul.f32 %v59, %v59
    %v62 = vmul.f32 %v60, %v56
    %v63 = vmul.f32 %v61, %v57
    %64 = vadd.xlane.f32.xlu0 %v62
    %v65 = vpop.xlane.xlu0 %64
    %66 = vadd.xlane.f32.xlu0 %v63
    %v67 = vpop.xlane.xlu0 %66
    %vm68 = vcmask 7168
    %69 = vst.msk [vmem:[%s4] sm:$0xff] %vm68, %v65
    %70 = vst.msk [vmem:[%s4 + $0x8] sm:$0xff] %vm68, %v67
    // Predicated region
    $region22: #{tpu_custom_call.1} parent=1 // pred_check
      _
    $region23: #{tpu_custom_call.1} parent=1 // pred_check_branch
      %72 = sbr.rel (0) target = $region25
    $region24: #{tpu_custom_call.1} parent=1 // pred_region
      _
    $region25: #{tpu_custom_call.1} parent=1 // pred_fallthru
      _
    // Predicated region
    $region26: #{tpu_custom_call.1} parent=1 // pred_check
      _
    $region27: #{tpu_custom_call.1} parent=1 // pred_check_branch
      %74 = sbr.rel (0) target = $region29
    $region28: #{tpu_custom_call.1} parent=1 // pred_region
      _
    $region29: #{tpu_custom_call.1} parent=1 // pred_fallthru
      _
    %75 = vsyncpa [#allocation3], 1

</llo_original>
